<compile_context>
chip_gen: v7x
topology: tpu7x:2x2x1
jax: 0.10.0
libtpu: 0.0.40
codegen_flags: <defaults>
</compile_context>

<pallas_src>
import jax
import jax.numpy as jnp
from jax.experimental import pallas as pl
from jax.experimental.pallas import tpu as pltpu


def gconv_kernel(a_ref, x_ref, w_ref, b_ref, o_ref):
    # a_ref: (bt, N, N)            x_ref: (bt*N, Fin)   [flattened wrapper-side]
    # w_ref: (Fin, 2*Fout) = [Wa^T | Wu^T]   b_ref: (1, 2*Fout) = [ba | bu]
    # o_ref: (bt, N*Fout)          [lane-dense output block]
    bt, n, _ = a_ref.shape
    fout = w_ref.shape[-1] // 2

    # --- fused linear: one MXU matmul over all bt*N rows and 2*Fout lanes ---
    y = jnp.dot(x_ref[...], w_ref[...],
                preferred_element_type=jnp.float32) + b_ref[...]
    y = jnp.maximum(y, 0.0)                        # relu on both halves
    relu_ax = y[:, :fout].reshape(bt, n, fout)
    relu_ux = y[:, fout:].reshape(bt, n, fout)

    # --- column L1-normalization of A via exact reciprocal + broadcast mul ---
    a = a_ref[...].astype(jnp.float32)             # (bt, N, N)
    denom = jnp.maximum(jnp.sum(jnp.abs(a), axis=1, keepdims=True), 1e-12)
    a_norm = a * (1.0 / denom)                     # (bt,1,N) broadcast over rows

    # --- batched bmm on the MXU + residual relu branch ---
    out = jnp.einsum("bij,bjf->bif", a_norm, relu_ax,
                     preferred_element_type=jnp.float32) + relu_ux
    # Lane-dense store: (bt, N, Fout) -> (bt, N*Fout) so the HBM writeback uses
    # full 128-lane vst instead of 32-lane masked stores.
    o_ref[...] = out.reshape(bt, n * fout).astype(o_ref.dtype)


def _pick_batch_tile(B, N, Fin, Fout, itemsize, vmem_block_budget_bytes):
    """Largest bt whose single-buffered A/x/out blocks fit the byte budget.

    The pipeline double-buffers each block, so the budget should be about half
    of what you are willing to spend on grid blocks in VMEM.
    """
    per_batch = itemsize * (N * N + N * Fin + N * Fout)
    bt = max(1, min(B, vmem_block_budget_bytes // per_batch))
    if bt < B:
        # Multiple grid steps: keep the block sublane dims 8-aligned.
        # (With a 12 MiB budget bt is in the thousands for small N/F, so the
        #  rounding loss is negligible.)
        bt = max(8, (bt // 8) * 8)
    return bt


def gconv(A, x, wa_t, ba, wu_t, bu, norm=True,
          vmem_block_budget_bytes=12 * 1024 * 1024):
    """A: (B,N,N), x: (B,N,Fin), wa_t/wu_t: (Fin,Fout), ba/bu: (Fout,)."""
    assert norm, "kernel implements the norm=True path (as in the default forward)"
    B, N, _ = A.shape
    Fin = x.shape[-1]
    Fout = wa_t.shape[-1]
    itemsize = jnp.dtype(x.dtype).itemsize

    # Fuse the two linears: single (Fin, 2*Fout) weight, (1, 2*Fout) bias.
    w = jnp.concatenate([wa_t, wu_t], axis=1)               # (Fin, 2*Fout)
    b = jnp.concatenate([ba, bu], axis=0).reshape(1, 2 * Fout)

    # VMEM-budget-driven batch tile; no forced >=2 grid steps (v5e/v6e are
    # single-TC, and on v7x megacore only pays once per-step work >> ~0.35us).
    bt = _pick_batch_tile(B, N, Fin, Fout, itemsize, vmem_block_budget_bytes)
    grid_len = pl.cdiv(B, bt)
    B_pad = grid_len * bt

    if B_pad != B:
        # Zero-pad the batch so prime / indivisible B does not degrade to
        # one-batch-per-step; padded rows are sliced off below.
        A = jnp.pad(A, ((0, B_pad - B), (0, 0), (0, 0)))
        x = jnp.pad(x, ((0, B_pad - B), (0, 0), (0, 0)))

    # Wrapper-side flatten (free, contiguous): the fused-linear operand becomes
    # a plain 2D sublane/lane tile, no in-kernel reshape of x.
    x2d = x.reshape(B_pad * N, Fin)

    flops = B_pad * (2 * N * Fin * (2 * Fout) + 2 * N * N * Fout)
    bytes_accessed = itemsize * (B_pad * N * N + B_pad * N * Fin
                                 + B_pad * N * Fout) \
        + itemsize * (Fin * 2 * Fout + 2 * Fout)

    out2d = pl.pallas_call(
        gconv_kernel,
        out_shape=jax.ShapeDtypeStruct((B_pad, N * Fout), x.dtype),
        grid_spec=pltpu.PrefetchScalarGridSpec(
            num_scalar_prefetch=0,
            grid=(grid_len,),
            in_specs=[
                pl.BlockSpec((bt, N, N), lambda i: (i, 0, 0)),
                pl.BlockSpec((bt * N, Fin), lambda i: (i, 0)),
                pl.BlockSpec((Fin, 2 * Fout), lambda i: (0, 0)),
                pl.BlockSpec((1, 2 * Fout), lambda i: (0, 0)),
            ],
            out_specs=pl.BlockSpec((bt, N * Fout), lambda i: (i, 0)),
        ),
        compiler_params=pltpu.CompilerParams(
            dimension_semantics=("parallel",),
            # Explicit ceiling: ~2x12 MiB of double-buffered blocks + weights
            # fits here and stays well under v7x's 64 MiB physical VMEM while
            # lifting v5e's 16 MiB scoped default.
            vmem_limit_bytes=32 * 1024 * 1024,
        ),
        cost_estimate=pl.CostEstimate(
            flops=flops, transcendentals=0, bytes_accessed=bytes_accessed),
    )(A, x2d, w, b)

    # Free, contiguous reshape back to (B, N, Fout); drop batch padding.
    return out2d[:B].reshape(B, N, Fout)


def gconv_reference(A, x, wa_t, ba, wu_t, bu):
    denom = jnp.maximum(jnp.sum(jnp.abs(A), axis=-2, keepdims=True), 1e-12)
    A_norm = A / denom
    ax = x @ wa_t + ba
    ux = x @ wu_t + bu
    return jnp.einsum("bij,bjf->bif", A_norm, jnp.maximum(ax, 0.0)) \
        + jnp.maximum(ux, 0.0)


if __name__ == "__main__":
    B, N = 8, 16
    in_features, out_features = 32, 32

    key = jax.random.PRNGKey(0)
    k_a, k_x, k_wa, k_ba, k_wu, k_bu = jax.random.split(key, 6)

    A = jax.random.uniform(k_a, (B, N, N), dtype=jnp.float32)
    x = jax.random.normal(k_x, (B, N, in_features), dtype=jnp.float32)

    # Deterministic nn.Linear-style init: U(-1/sqrt(fan_in), 1/sqrt(fan_in)).
    bound = 1.0 / (in_features ** 0.5)
    # PyTorch weight is (out, in); we store the transposed (in, out) layout.
    wa_t = jax.random.uniform(k_wa, (in_features, out_features),
                              minval=-bound, maxval=bound, dtype=jnp.float32)
    ba = jax.random.uniform(k_ba, (out_features,),
                            minval=-bound, maxval=bound, dtype=jnp.float32)
    wu_t = jax.random.uniform(k_wu, (in_features, out_features),
                              minval=-bound, maxval=bound, dtype=jnp.float32)
    bu = jax.random.uniform(k_bu, (out_features,),
                            minval=-bound, maxval=bound, dtype=jnp.float32)

    out = gconv(A, x, wa_t, ba, wu_t, bu)
    out = jax.block_until_ready(out)

    ref = gconv_reference(A, x, wa_t, ba, wu_t, bu)
    assert out.shape == (B, N, out_features)
    assert jnp.allclose(out, ref, atol=1e-4, rtol=1e-4), "mismatch vs reference"

    print("KERNEL_OK")
</pallas_src>

<mosaic_0001>
module attributes {stable_mosaic.version = 11 : i64} {
  func.func @gconv_kernel(%arg0: i32, %arg1: memref<8x16x16xf32, #tpu.memory_space<vmem>>, %arg2: memref<128x32xf32, #tpu.memory_space<vmem>>, %arg3: memref<32x64xf32, #tpu.memory_space<vmem>>, %arg4: memref<1x64xf32, #tpu.memory_space<vmem>>, %arg5: memref<8x512xf32, #tpu.memory_space<vmem>>) attributes {dimension_semantics = [#tpu.dimension_semantics<parallel>], iteration_bounds = array<i64: 1>, scalar_prefetch = 0 : i64, scratch_operands = 0 : i64, tpu.core_type = #tpu.core_type<tc>, window_params = [{transform_indices = @transform_0, window_bounds = array<i64: 8, 16, 16>}, {transform_indices = @transform_1, window_bounds = array<i64: 128, 32>}, {pipeline_mode = #tpu.pipeline_mode<synchronous>, transform_indices = @transform_2, window_bounds = array<i64: 32, 64>}, {pipeline_mode = #tpu.pipeline_mode<synchronous>, transform_indices = @transform_3, window_bounds = array<i64: 1, 64>}, {transform_indices = @transform_4, window_bounds = array<i64: 8, 512>}]} {
    %c0 = arith.constant 0 : index
    %c0_0 = arith.constant 0 : index
    %0 = vector.load %arg2[%c0, %c0_0] : memref<128x32xf32, #tpu.memory_space<vmem>>, vector<128x32xf32>
    %c0_1 = arith.constant 0 : index
    %c0_2 = arith.constant 0 : index
    %1 = vector.load %arg3[%c0_1, %c0_2] : memref<32x64xf32, #tpu.memory_space<vmem>>, vector<32x64xf32>
    %cst = arith.constant dense<0.000000e+00> : vector<128x64xf32>
    %2 = tpu.matmul %0, %1, %cst {dimension_numbers = #tpu.dot_dimension_numbers<[1], [0], [0], [1], [0, 0, 1, 1], [], []>} : vector<128x32xf32>, vector<32x64xf32>, vector<128x64xf32> -> vector<128x64xf32>
    %c0_3 = arith.constant 0 : index
    %c0_4 = arith.constant 0 : index
    %3 = vector.load %arg4[%c0_3, %c0_4] : memref<1x64xf32, #tpu.memory_space<vmem>>, vector<1x64xf32>
    %4 = vector.broadcast %3 : vector<1x64xf32> to vector<128x64xf32>
    %5 = arith.addf %2, %4 : vector<128x64xf32>
    %cst_5 = arith.constant 0.000000e+00 : f32
    %6 = vector.broadcast %cst_5 : f32 to vector<128x64xf32>
    %7 = arith.maximumf %5, %6 : vector<128x64xf32>
    %8 = vector.extract_strided_slice %7 {offsets = [0, 0], sizes = [128, 32], strides = [1, 1]} : vector<128x64xf32> to vector<128x32xf32>
    %9 = vector.shape_cast %8 : vector<128x32xf32> to vector<8x16x32xf32>
    %10 = vector.extract_strided_slice %7 {offsets = [0, 32], sizes = [128, 32], strides = [1, 1]} : vector<128x64xf32> to vector<128x32xf32>
    %11 = vector.shape_cast %10 : vector<128x32xf32> to vector<8x16x32xf32>
    %c0_6 = arith.constant 0 : index
    %c0_7 = arith.constant 0 : index
    %c0_8 = arith.constant 0 : index
    %12 = vector.load %arg1[%c0_6, %c0_7, %c0_8] : memref<8x16x16xf32, #tpu.memory_space<vmem>>, vector<8x16x16xf32>
    %13 = math.absf %12 : vector<8x16x16xf32>
    %cst_9 = arith.constant dense<0.000000e+00> : vector<8x16xf32>
    %14 = vector.multi_reduction <add>, %13, %cst_9 [1] : vector<8x16x16xf32> to vector<8x16xf32>
    %15 = vector.shape_cast %14 : vector<8x16xf32> to vector<8x1x16xf32>
    %cst_10 = arith.constant 9.99999996E-13 : f32
    %16 = vector.broadcast %cst_10 : f32 to vector<8x1x16xf32>
    %17 = arith.maximumf %15, %16 : vector<8x1x16xf32>
    %cst_11 = arith.constant 1.000000e+00 : f32
    %18 = vector.broadcast %cst_11 : f32 to vector<8x1x16xf32>
    %19 = arith.divf %18, %17 : vector<8x1x16xf32>
    %20 = vector.broadcast %19 : vector<8x1x16xf32> to vector<8x16x16xf32>
    %21 = arith.mulf %12, %20 : vector<8x16x16xf32>
    "tpu.trace_start"() <{level = 10 : i32, message = "bij,bjf->bif"}> : () -> ()
    %cst_12 = arith.constant dense<0.000000e+00> : vector<8x16x32xf32>
    %22 = tpu.matmul %21, %9, %cst_12 {dimension_numbers = #tpu.dot_dimension_numbers<[2], [1], [1], [2], [0, 0, 0, 1, 1, 2], [0], [0]>} : vector<8x16x16xf32>, vector<8x16x32xf32>, vector<8x16x32xf32> -> vector<8x16x32xf32>
    "tpu.trace_stop"() : () -> ()
    %23 = arith.addf %22, %11 : vector<8x16x32xf32>
    %24 = vector.shape_cast %23 : vector<8x16x32xf32> to vector<8x512xf32>
    %c0_13 = arith.constant 0 : index
    %c0_14 = arith.constant 0 : index
    %25 = vector.load %arg5[%c0_13, %c0_14] : memref<8x512xf32, #tpu.memory_space<vmem>>, vector<8x512xf32>
    tpu.vector_store %arg5[%c0_13, %c0_14], %24 {strides = array<i32>} : memref<8x512xf32, #tpu.memory_space<vmem>>, vector<8x512xf32>,
    return
  }
  func.func @transform_0(%arg0: i32) -> (i32, i32, i32) {
    %c0_i32 = arith.constant 0 : i32
    %c0_i32_0 = arith.constant 0 : i32
    %c0_i32_1 = arith.constant 0 : i32
    return %arg0, %c0_i32, %c0_i32_0 : i32, i32, i32
  }
  func.func @transform_1(%arg0: i32) -> (i32, i32) {
    %c0_i32 = arith.constant 0 : i32
    %c0_i32_0 = arith.constant 0 : i32
    return %arg0, %c0_i32 : i32, i32
  }
  func.func @transform_2(%arg0: i32) -> (i32, i32) {
    %c0_i32 = arith.constant 0 : i32
    %c0_i32_0 = arith.constant 0 : i32
    %c0_i32_1 = arith.constant 0 : i32
    return %c0_i32, %c0_i32_0 : i32, i32
  }
  func.func @transform_3(%arg0: i32) -> (i32, i32) {
    %c0_i32 = arith.constant 0 : i32
    %c0_i32_0 = arith.constant 0 : i32
    %c0_i32_1 = arith.constant 0 : i32
    return %c0_i32, %c0_i32_0 : i32, i32
  }
  func.func @transform_4(%arg0: i32) -> (i32, i32) {
    %c0_i32 = arith.constant 0 : i32
    %c0_i32_0 = arith.constant 0 : i32
    return %arg0, %c0_i32 : i32, i32
  }
}

</mosaic_0001>

<llo_original>
// kernel: tpu_custom_call.1
$region0: #{tpu_custom_call.1}
  #allocation0 [shape = 'u32[]', space=smem, size = 0x4, offset = 0x4, fixed_abs, tag = 'smem constant byte address 0x4 - core index']
  #allocation1 [shape = 'u32[144,128]{1,0:T(1,128)}', space=vmem, size = 0x12000, scoped, tag = 'internal scratch']
  %s0 = inlined_call_operand.vmem [shape: f32[8,16,16], index: 0, kind: input, shape index: {}]
  %s1 = inlined_call_operand.vmem [shape: f32[128,32], index: 1, kind: input, shape index: {}]
  %s2 = inlined_call_operand.vmem [shape: f32[32,64], index: 2, kind: input, shape index: {}]
  %s3 = inlined_call_operand.vmem [shape: f32[1,64], index: 3, kind: input, shape index: {}]
  %s4 = inlined_call_operand.hbm [shape: f32[8,512], index: 4, kind: output, shape index: {}]
  %s5 = sld [smem:[#allocation0]]
  $region26: #{tpu_custom_call.1} parent=0
    _
  %s7 = ssub.s32 1, %s5
  %s8 = scalar_select 0, %s7, %s5
  $region1: #{tpu_custom_call.1} parent=0
    #allocation2 [shape = 'u8[16384]{0}', space=vmem, size = 0x4000, scoped, tag = 'output window, operand 0, single buffered']
    #allocation3 [shape = 's32[1]{0}', space=sflag, size = 0x4, scoped, tag = 'scoped memory for tpu_custom_call.1']
    %9 = vsyncpa [#allocation3], 0
    // Predicated region
    $region2: #{tpu_custom_call.1} parent=1 // pred_check
      _
    $region3: #{tpu_custom_call.1} parent=1 // pred_check_branch
      %11 = sbr.rel (0) target = $region5
    $region4: #{tpu_custom_call.1} parent=1 // pred_region
      _
    $region5: #{tpu_custom_call.1} parent=1 // pred_fallthru
      _
    // Predicated region
    $region6: #{tpu_custom_call.1} parent=1 // pred_check
      _
    $region7: #{tpu_custom_call.1} parent=1 // pred_check_branch
      %13 = sbr.rel (0) target = $region9
    $region8: #{tpu_custom_call.1} parent=1 // pred_region
      _
    $region9: #{tpu_custom_call.1} parent=1 // pred_fallthru
      _
    // Predicated region
    $region10: #{tpu_custom_call.1} parent=1 // pred_check
      _
    $region11: #{tpu_custom_call.1} parent=1 // pred_check_branch
      %15 = sbr.rel (0) target = $region13
    $region12: #{tpu_custom_call.1} parent=1 // pred_region
      _
    $region13: #{tpu_custom_call.1} parent=1 // pred_fallthru
      _
    // Predicated region
    $region14: #{tpu_custom_call.1} parent=1 // pred_check
      _
    $region15: #{tpu_custom_call.1} parent=1 // pred_check_branch
      %17 = sbr.rel (0) target = $region17
    $region16: #{tpu_custom_call.1} parent=1 // pred_region
      _
    $region17: #{tpu_custom_call.1} parent=1 // pred_fallthru
      _
    %v18 = vld [vmem:[%s1] sm:$0xff]
    %v19 = vld [vmem:[%s1 + $0x8] sm:$0xff]
    %v20 = vld [vmem:[%s1 + $0x10] sm:$0xff]
    %v21 = vld [vmem:[%s1 + $0x18] sm:$0xff]
    %v22 = vld [vmem:[%s1 + $0x20] sm:$0xff]
    %v23 = vld [vmem:[%s1 + $0x28] sm:$0xff]
    %v24 = vld [vmem:[%s1 + $0x30] sm:$0xff]
    %v25 = vld [vmem:[%s1 + $0x38] sm:$0xff]
    %v26 = vld [vmem:[%s1 + $0x40] sm:$0xff]
    %v27 = vld [vmem:[%s1 + $0x48] sm:$0xff]
    %v28 = vld [vmem:[%s1 + $0x50] sm:$0xff]
    %v29 = vld [vmem:[%s1 + $0x58] sm:$0xff]
    %v30 = vld [vmem:[%s1 + $0x60] sm:$0xff]
    %v31 = vld [vmem:[%s1 + $0x68] sm:$0xff]
    %v32 = vld [vmem:[%s1 + $0x70] sm:$0xff]
    %v33 = vld [vmem:[%s1 + $0x78] sm:$0xff]
    %v34 = vld [vmem:[%s2] sm:$0xff]
    %v35 = vld [vmem:[%s2 + $0x8] sm:$0xff]
    %v36 = vld [vmem:[%s2 + $0x10] sm:$0xff]
    %v37 = vld [vmem:[%s2 + $0x18] sm:$0xff]
    %v38 = vld [vmem:[%s3] sm:$0x1]
    %v40 = vlaneseq
    %v41 = vshrl.u32 %v40, 7
    %v42 = vsub.s32 0, %v41
    %v43 = vrot.slane %v38, %v42
    %vm45 = vcmask 261120
    %v47 = vsel %vm45, %v18, 0
    %v50 = vsel %vm45, %v19, 0
    %v53 = vsel %vm45, %v20, 0
    %v56 = vsel %vm45, %v21, 0
    %v59 = vsel %vm45, %v22, 0
    %v62 = vsel %vm45, %v23, 0
    %v65 = vsel %vm45, %v24, 0
    %v68 = vsel %vm45, %v25, 0
    %v71 = vsel %vm45, %v26, 0
    %v74 = vsel %vm45, %v27, 0
    %v77 = vsel %vm45, %v28, 0
    %v80 = vsel %vm45, %v29, 0
    %v83 = vsel %vm45, %v30, 0
    %v86 = vsel %vm45, %v31, 0
    %v89 = vsel %vm45, %v32, 0
    %v92 = vsel %vm45, %v33, 0
    %94 = vmatprep.subr.mxu0 0.0
    %95 = vmatpush1.msra.mxu0 %v34
    %96 = vmatprep.subr.mxu0 0.0
    %97 = vmatpush1.msra.mxu0 %v35
    %98 = vmatprep.subr.mxu0 0.0
    %99 = vmatpush1.msra.mxu0 %v36
    %100 = vmatprep.subr.mxu0 0.0
    %101 = vmatpush1.msra.mxu0 %v37
    %102 = vmatprep.subr.mxu0 0.0
    %103 = vmatpush1.msra.mxu0 0.0
    %104 = vmatprep.subr.mxu0 0.0
    %105 = vmatpush1.msra.mxu0 0.0
    %106 = vmatprep.subr.mxu0 0.0
    %107 = vmatpush1.msra.mxu0 0.0
    %108 = vmatprep.subr.mxu0 0.0
    %109 = vmatpush1.msra.mxu0 0.0
    %110 = vmatprep.subr.mxu0 0.0
    %111 = vmatpush1.msra.mxu0 0.0
    %112 = vmatprep.subr.mxu0 0.0
    %113 = vmatpush1.msra.mxu0 0.0
    %114 = vmatprep.subr.mxu0 0.0
    %115 = vmatpush1.msra.mxu0 0.0
    %116 = vmatprep.subr.mxu0 0.0
    %117 = vmatpush1.msra.mxu0 0.0
    %118 = vmatprep.subr.mxu0 0.0
    %119 = vmatpush1.msra.mxu0 0.0
    %120 = vmatprep.subr.mxu0 0.0
    %121 = vmatpush1.msra.mxu0 0.0
    %122 = vmatprep.subr.mxu0 0.0
    %123 = vmatpush1.msra.mxu0 0.0
    %124 = vmatprep.subr.mxu0 0.0
    %125 = vmatpush1.msra.mxu0 0.0
    %126 = vmatprep.subr.mxu0 0.0
    %127 = vmatpush1.msra.mxu0 0.0
    %128 = vmatprep.subr.mxu0 0.0
    %129 = vmatpush1.msra.mxu0 0.0
    %130 = vmatprep.subr.mxu0 0.0
    %131 = vmatpush1.msra.mxu0 0.0
    %132 = vmatprep.subr.mxu0 0.0
    %133 = vmatpush1.msra.mxu0 0.0
    %134 = vmatprep.subr.mxu0 0.0
    %135 = vmatpush1.msra.mxu0 0.0
    %136 = vmatprep.subr.mxu0 0.0
    %137 = vmatpush1.msra.mxu0 0.0
    %138 = vmatprep.subr.mxu0 0.0
    %139 = vmatpush1.msra.mxu0 0.0
    %140 = vmatprep.subr.mxu0 0.0
    %141 = vmatpush1.msra.mxu0 0.0
    %142 = vmatprep.subr.mxu0 0.0
    %143 = vmatpush1.msra.mxu0 0.0
    %144 = vmatprep.subr.mxu0 0.0
    %145 = vmatpush1.msra.mxu0 0.0
    %146 = vmatprep.subr.mxu0 0.0
    %147 = vmatpush1.msra.mxu0 0.0
    %148 = vmatprep.subr.mxu0 0.0
    %149 = vmatpush1.msra.mxu0 0.0
    %150 = vmatprep.subr.mxu0 0.0
    %151 = vmatpush1.msra.mxu0 0.0
    %152 = vmatprep.subr.mxu0 0.0
    %153 = vmatpush1.msra.mxu0 0.0
    %154 = vmatprep.subr.mxu0 0.0
    %155 = vmatpush1.msra.mxu0 0.0
    %156 = vmatprep.subr.mxu0 0.0
    %157 = vmatpush1.msra.mxu0 0.0
    %158 = vmatprep.mubr.f32.mxu0 0.0
    %159 = vmatmul.mubr.f32.gmra.mrb[0].mxu0 %v47
    %v160 = vpop.f32.mrb[0].mxu0
    %v161 = vadd.f32 %v43, %v160
    %v162 = vpop.f32.mrb[0].mxu0
    %163 = vmatprep.mubr.f32.mxu0 0.0
    %164 = vmatmul.mubr.f32.gmra.mrb[0].mxu0 %v50
    %v165 = vpop.f32.mrb[0].mxu0
    %v166 = vadd.f32 %v43, %v165
    %v167 = vpop.f32.mrb[0].mxu0
    %168 = vmatprep.mubr.f32.mxu0 0.0
    %169 = vmatmul.mubr.f32.gmra.mrb[0].mxu0 %v53
    %v170 = vpop.f32.mrb[0].mxu0
    %v171 = vadd.f32 %v43, %v170
    %v172 = vpop.f32.mrb[0].mxu0
    %173 = vmatprep.mubr.f32.mxu0 0.0
    %174 = vmatmul.mubr.f32.gmra.mrb[0].mxu0 %v56
    %v175 = vpop.f32.mrb[0].mxu0
    %v176 = vadd.f32 %v43, %v175
    %v177 = vpop.f32.mrb[0].mxu0
    %178 = vmatprep.mubr.f32.mxu0 0.0
    %179 = vmatmul.mubr.f32.gmra.mrb[0].mxu0 %v59
    %v180 = vpop.f32.mrb[0].mxu0
    %v181 = vadd.f32 %v43, %v180
    %v182 = vpop.f32.mrb[0].mxu0
    %183 = vmatprep.mubr.f32.mxu0 0.0
    %184 = vmatmul.mubr.f32.gmra.mrb[0].mxu0 %v62
    %v185 = vpop.f32.mrb[0].mxu0
    %v186 = vadd.f32 %v43, %v185
    %v187 = vpop.f32.mrb[0].mxu0
    %188 = vmatprep.mubr.f32.mxu0 0.0
    %189 = vmatmul.mubr.f32.gmra.mrb[0].mxu0 %v65
    %v190 = vpop.f32.mrb[0].mxu0
    %v191 = vadd.f32 %v43, %v190
    %v192 = vpop.f32.mrb[0].mxu0
    %193 = vmatprep.mubr.f32.mxu0 0.0
    %194 = vmatmul.mubr.f32.gmra.mrb[0].mxu0 %v68
    %v195 = vpop.f32.mrb[0].mxu0
    %v196 = vadd.f32 %v43, %v195
    %v197 = vpop.f32.mrb[0].mxu0
    %198 = vmatprep.mubr.f32.mxu0 0.0
    %199 = vmatmul.mubr.f32.gmra.mrb[0].mxu0 %v71
    %v200 = vpop.f32.mrb[0].mxu0
    %v201 = vadd.f32 %v43, %v200
    %v202 = vpop.f32.mrb[0].mxu0
    %203 = vmatprep.mubr.f32.mxu0 0.0
    %204 = vmatmul.mubr.f32.gmra.mrb[0].mxu0 %v74
    %v205 = vpop.f32.mrb[0].mxu0
    %v206 = vadd.f32 %v43, %v205
    %v207 = vpop.f32.mrb[0].mxu0
    %208 = vmatprep.mubr.f32.mxu0 0.0
    %209 = vmatmul.mubr.f32.gmra.mrb[0].mxu0 %v77
    %v210 = vpop.f32.mrb[0].mxu0
    %v211 = vadd.f32 %v43, %v210
    %v212 = vpop.f32.mrb[0].mxu0
    %213 = vmatprep.mubr.f32.mxu0 0.0
    %214 = vmatmul.mubr.f32.gmra.mrb[0].mxu0 %v80
    %v215 = vpop.f32.mrb[0].mxu0
    %v216 = vadd.f32 %v43, %v215
    %v217 = vpop.f32.mrb[0].mxu0
    %218 = vmatprep.mubr.f32.mxu0 0.0
    %219 = vmatmul.mubr.f32.gmra.mrb[0].mxu0 %v83
    %v220 = vpop.f32.mrb[0].mxu0
    %v221 = vadd.f32 %v43, %v220
    %v222 = vpop.f32.mrb[0].mxu0
    %223 = vmatprep.mubr.f32.mxu0 0.0
    %224 = vmatmul.mubr.f32.gmra.mrb[0].mxu0 %v86
    %v225 = vpop.f32.mrb[0].mxu0
    %v226 = vadd.f32 %v43, %v225
    %v227 = vpop.f32.mrb[0].mxu0
    %228 = vmatprep.mubr.f32.mxu0 0.0
    %229 = vmatmul.mubr.f32.gmra.mrb[0].mxu0 %v89
    %v230 = vpop.f32.mrb[0].mxu0
    %v231 = vadd.f32 %v43, %v230
    %v232 = vpop.f32.mrb[0].mxu0
    %233 = vmatprep.mubr.f32.mxu0 0.0
    %234 = vmatmul.mubr.f32.gmra.mrb[0].mxu0 %v92
    %v235 = vpop.f32.mrb[0].mxu0
    %v236 = vadd.f32 %v43, %v235
    %v237 = vpop.f32.mrb[0].mxu0
    %238 = vdwg.mxu0
    %v239 = vmax.f32 %v161, 0.0
    %v240 = vmax.f32 %v166, 0.0
    %v241 = vmax.f32 %v171, 0.0
    %v242 = vmax.f32 %v176, 0.0
    %v243 = vmax.f32 %v181, 0.0
    %v244 = vmax.f32 %v186, 0.0
    %v245 = vmax.f32 %v191, 0.0
    %v246 = vmax.f32 %v196, 0.0
    %v247 = vmax.f32 %v201, 0.0
    %v248 = vmax.f32 %v206, 0.0
    %v249 = vmax.f32 %v211, 0.0
    %v250 = vmax.f32 %v216, 0.0
    %v251 = vmax.f32 %v221, 0.0
    %v252 = vmax.f32 %v226, 0.0
    %v253 = vmax.f32 %v231, 0.0
    %v254 = vmax.f32 %v236, 0.0
    %v255 = vld [vmem:[%s0] sm:$0xff]
    %v256 = vld [vmem:[%s0 + $0x8] sm:$0xff]
    %v257 = vld [vmem:[%s0 + $0x10] sm:$0xff]
    %v258 = vld [vmem:[%s0 + $0x18] sm:$0xff]
    %v259 = vld [vmem:[%s0 + $0x20] sm:$0xff]
    %v260 = vld [vmem:[%s0 + $0x28] sm:$0xff]
    %v261 = vld [vmem:[%s0 + $0x30] sm:$0xff]
    %v262 = vld [vmem:[%s0 + $0x38] sm:$0xff]
    %v263 = vld [vmem:[%s0 + $0x40] sm:$0xff]
    %v264 = vld [vmem:[%s0 + $0x48] sm:$0xff]
    %v265 = vld [vmem:[%s0 + $0x50] sm:$0xff]
    %v266 = vld [vmem:[%s0 + $0x58] sm:$0xff]
    %v267 = vld [vmem:[%s0 + $0x60] sm:$0xff]
    %v268 = vld [vmem:[%s0 + $0x68] sm:$0xff]
    %v269 = vld [vmem:[%s0 + $0x70] sm:$0xff]
    %v270 = vld [vmem:[%s0 + $0x78] sm:$0xff]
    %v271 = vand.u32 2147483647, %v255
    %v272 = vand.u32 2147483647, %v256
    %v273 = vand.u32 2147483647, %v257
    %v274 = vand.u32 2147483647, %v258
    %v275 = vand.u32 2147483647, %v259
    %v276 = vand.u32 2147483647, %v260
    %v277 = vand.u32 2147483647, %v261
    %v278 = vand.u32 2147483647, %v262
    %v279 = vand.u32 2147483647, %v263
    %v280 = vand.u32 2147483647, %v264
    %v281 = vand.u32 2147483647, %v265
    %v282 = vand.u32 2147483647, %v266
    %v283 = vand.u32 2147483647, %v267
    %v284 = vand.u32 2147483647, %v268
    %v285 = vand.u32 2147483647, %v269
    %v286 = vand.u32 2147483647, %v270
    %vm287 = vcmask 130048
    %v288 = vsel %vm287, %v271, 0.0
    %v289 = vsel %vm287, %v272, 0.0
    %v290 = vadd.f32 %v288, %v289
    %v291 = vrot.slane %v290, 4
    %v292 = vadd.f32 %v290, %v291
    %v293 = vrot.slane %v292, 2
    %v294 = vadd.f32 %v292, %v293
    %v295 = vrot.slane %v294, 1
    %v296 = vadd.f32 %v294, %v295
    %v297 = vsel %vm287, %v273, 0.0
    %v298 = vsel %vm287, %v274, 0.0
    %v299 = vadd.f32 %v297, %v298
    %v300 = vrot.slane %v299, 4
    %v301 = vadd.f32 %v299, %v300
    %v302 = vrot.slane %v301, 2
    %v303 = vadd.f32 %v301, %v302
    %v304 = vrot.slane %v303, 1
    %v305 = vadd.f32 %v303, %v304
    %v306 = vsel %vm287, %v275, 0.0
    %v307 = vsel %vm287, %v276, 0.0
    %v308 = vadd.f32 %v306, %v307
    %v309 = vrot.slane %v308, 4
    %v310 = vadd.f32 %v308, %v309
    %v311 = vrot.slane %v310, 2
    %v312 = vadd.f32 %v310, %v311
    %v313 = vrot.slane %v312, 1
    %v314 = vadd.f32 %v312, %v313
    %v315 = vsel %vm287, %v277, 0.0
    %v316 = vsel %vm287, %v278, 0.0
    %v317 = vadd.f32 %v315, %v316
    %v318 = vrot.slane %v317, 4
    %v319 = vadd.f32 %v317, %v318
    %v320 = vrot.slane %v319, 2
    %v321 = vadd.f32 %v319, %v320
    %v322 = vrot.slane %v321, 1
    %v323 = vadd.f32 %v321, %v322
    %v324 = vsel %vm287, %v279, 0.0
    %v325 = vsel %vm287, %v280, 0.0
    %v326 = vadd.f32 %v324, %v325
    %v327 = vrot.slane %v326, 4
    %v328 = vadd.f32 %v326, %v327
    %v329 = vrot.slane %v328, 2
    %v330 = vadd.f32 %v328, %v329
    %v331 = vrot.slane %v330, 1
    %v332 = vadd.f32 %v330, %v331
    %v333 = vsel %vm287, %v281, 0.0
    %v334 = vsel %vm287, %v282, 0.0
    %v335 = vadd.f32 %v333, %v334
    %v336 = vrot.slane %v335, 4
    %v337 = vadd.f32 %v335, %v336
    %v338 = vrot.slane %v337, 2
    %v339 = vadd.f32 %v337, %v338
    %v340 = vrot.slane %v339, 1
    %v341 = vadd.f32 %v339, %v340
    %v342 = vsel %vm287, %v283, 0.0
    %v343 = vsel %vm287, %v284, 0.0
    %v344 = vadd.f32 %v342, %v343
    %v345 = vrot.slane %v344, 4
    %v346 = vadd.f32 %v344, %v345
    %v347 = vrot.slane %v346, 2
    %v348 = vadd.f32 %v346, %v347
    %v349 = vrot.slane %v348, 1
    %v350 = vadd.f32 %v348, %v349
    %v351 = vsel %vm287, %v285, 0.0
    %v352 = vsel %vm287, %v286, 0.0
    %v353 = vadd.f32 %v351, %v352
    %v354 = vrot.slane %v353, 4
    %v355 = vadd.f32 %v353, %v354
    %v356 = vrot.slane %v355, 2
    %v357 = vadd.f32 %v355, %v356
    %v358 = vrot.slane %v357, 1
    %v359 = vadd.f32 %v357, %v358
    %v360 = vmax.f32 %v296, 1e-12
    %v361 = vmax.f32 %v305, 1e-12
    %v362 = vmax.f32 %v314, 1e-12
    %v363 = vmax.f32 %v323, 1e-12
    %v364 = vmax.f32 %v332, 1e-12
    %v365 = vmax.f32 %v341, 1e-12
    %v366 = vmax.f32 %v350, 1e-12
    %v367 = vmax.f32 %v359, 1e-12
    %v368 = vrcp.pop %v360
    %v369 = vmul.f32 1.0, %v368
    %v370 = vrcp.pop %v361
    %v371 = vmul.f32 1.0, %v370
    %v372 = vrcp.pop %v362
    %v373 = vmul.f32 1.0, %v372
    %v374 = vrcp.pop %v363
    %v375 = vmul.f32 1.0, %v374
    %v376 = vrcp.pop %v364
    %v377 = vmul.f32 1.0, %v376
    %v378 = vrcp.pop %v365
    %v379 = vmul.f32 1.0, %v378
    %v380 = vrcp.pop %v366
    %v381 = vmul.f32 1.0, %v380
    %v382 = vrcp.pop %v367
    %v383 = vmul.f32 1.0, %v382
    %v384 = vmul.f32 %v255, %v369
    %v385 = vmul.f32 %v256, %v369
    %v386 = vmul.f32 %v257, %v371
    %v387 = vmul.f32 %v258, %v371
    %v388 = vmul.f32 %v259, %v373
    %v389 = vmul.f32 %v260, %v373
    %v390 = vmul.f32 %v261, %v375
    %v391 = vmul.f32 %v262, %v375
    %v392 = vmul.f32 %v263, %v377
    %v393 = vmul.f32 %v264, %v377
    %v394 = vmul.f32 %v265, %v379
    %v395 = vmul.f32 %v266, %v379
    %v396 = vmul.f32 %v267, %v381
    %v397 = vmul.f32 %v268, %v381
    %v398 = vmul.f32 %v269, %v383
    %v399 = vmul.f32 %v270, %v383
    %402 = vrot.lane.b32.xlu0 %v239, 96
    %v403 = vpop.permute.xlu0 %402
    %404 = vrot.lane.b32.xlu0 %v240, 96
    %v405 = vpop.permute.xlu0 %404
    %v409 = vsel %vm287, %v384, 0
    %v412 = vsel %vm287, %v385, 0
    %414 = vmatprep.subr.mxu0 0.0
    %415 = vmatpush1.msra.mxu0 %v239
    %416 = vmatprep.subr.mxu0 0.0
    %417 = vmatpush1.msra.mxu0 %v240
    %418 = vmatprep.subr.mxu0 0.0
    %419 = vmatpush1.msra.mxu0 0.0
    %420 = vmatprep.subr.mxu0 0.0
    %421 = vmatpush1.msra.mxu0 0.0
    %422 = vmatprep.subr.mxu0 0.0
    %423 = vmatpush1.msra.mxu0 0.0
    %424 = vmatprep.subr.mxu0 0.0
    %425 = vmatpush1.msra.mxu0 0.0
    %426 = vmatprep.subr.mxu0 0.0
    %427 = vmatpush1.msra.mxu0 0.0
    %428 = vmatprep.subr.mxu0 0.0
    %429 = vmatpush1.msra.mxu0 0.0
    %430 = vmatprep.subr.mxu0 0.0
    %431 = vmatpush1.msra.mxu0 0.0
    %432 = vmatprep.subr.mxu0 0.0
    %433 = vmatpush1.msra.mxu0 0.0
    %434 = vmatprep.subr.mxu0 0.0
    %435 = vmatpush1.msra.mxu0 0.0
    %436 = vmatprep.subr.mxu0 0.0
    %437 = vmatpush1.msra.mxu0 0.0
    %438 = vmatprep.subr.mxu0 0.0
    %439 = vmatpush1.msra.mxu0 0.0
    %440 = vmatprep.subr.mxu0 0.0
    %441 = vmatpush1.msra.mxu0 0.0
    %442 = vmatprep.subr.mxu0 0.0
    %443 = vmatpush1.msra.mxu0 0.0
    %444 = vmatprep.subr.mxu0 0.0
    %445 = vmatpush1.msra.mxu0 0.0
    %446 = vmatprep.subr.mxu0 0.0
    %447 = vmatpush1.msra.mxu0 0.0
    %448 = vmatprep.subr.mxu0 0.0
    %449 = vmatpush1.msra.mxu0 0.0
    %450 = vmatprep.subr.mxu0 0.0
    %451 = vmatpush1.msra.mxu0 0.0
    %452 = vmatprep.subr.mxu0 0.0
    %453 = vmatpush1.msra.mxu0 0.0
    %454 = vmatprep.subr.mxu0 0.0
    %455 = vmatpush1.msra.mxu0 0.0
    %456 = vmatprep.subr.mxu0 0.0
    %457 = vmatpush1.msra.mxu0 0.0
    %458 = vmatprep.subr.mxu0 0.0
    %459 = vmatpush1.msra.mxu0 0.0
    %460 = vmatprep.subr.mxu0 0.0
    %461 = vmatpush1.msra.mxu0 0.0
    %462 = vmatprep.subr.mxu0 0.0
    %463 = vmatpush1.msra.mxu0 0.0
    %464 = vmatprep.subr.mxu0 0.0
    %465 = vmatpush1.msra.mxu0 0.0
    %466 = vmatprep.subr.mxu0 0.0
    %467 = vmatpush1.msra.mxu0 0.0
    %468 = vmatprep.subr.mxu0 0.0
    %469 = vmatpush1.msra.mxu0 0.0
    %470 = vmatprep.subr.mxu0 0.0
    %471 = vmatpush1.msra.mxu0 0.0
    %472 = vmatprep.subr.mxu0 0.0
    %473 = vmatpush1.msra.mxu0 0.0
    %474 = vmatprep.subr.mxu0 0.0
    %475 = vmatpush1.msra.mxu0 0.0
    %476 = vmatprep.subr.mxu0 0.0
    %477 = vmatpush1.msra.mxu0 0.0
    %478 = vmatprep.mubr.f32.mxu0 0.0
    %479 = vmatmul.mubr.f32.gmra.mrb[0].mxu0 %v409
    %v480 = vpop.f32.mrb[0].mxu0
    %v481 = vadd.f32 %v403, %v480
    %v482 = vpop.f32.mrb[0].mxu0
    %483 = vmatprep.mubr.f32.mxu0 0.0
    %484 = vmatmul.mubr.f32.gmra.mrb[0].mxu0 %v412
    %v485 = vpop.f32.mrb[0].mxu0
    %v486 = vadd.f32 %v405, %v485
    %v487 = vpop.f32.mrb[0].mxu0
    %488 = vdwg.mxu0
    %491 = vrot.lane.b32.xlu0 %v241, 96
    %v492 = vpop.permute.xlu0 %491
    %493 = vrot.lane.b32.xlu0 %v242, 96
    %v494 = vpop.permute.xlu0 %493
    %v498 = vsel %vm287, %v386, 0
    %v501 = vsel %vm287, %v387, 0
    %503 = vmatprep.subr.mxu0 0.0
    %504 = vmatpush1.msra.mxu0 %v241
    %505 = vmatprep.subr.mxu0 0.0
    %506 = vmatpush1.msra.mxu0 %v242
    %507 = vmatprep.subr.mxu0 0.0
    %508 = vmatpush1.msra.mxu0 0.0
    %509 = vmatprep.subr.mxu0 0.0
    %510 = vmatpush1.msra.mxu0 0.0
    %511 = vmatprep.subr.mxu0 0.0
    %512 = vmatpush1.msra.mxu0 0.0
    %513 = vmatprep.subr.mxu0 0.0
    %514 = vmatpush1.msra.mxu0 0.0
    %515 = vmatprep.subr.mxu0 0.0
    %516 = vmatpush1.msra.mxu0 0.0
    %517 = vmatprep.subr.mxu0 0.0
    %518 = vmatpush1.msra.mxu0 0.0
    %519 = vmatprep.subr.mxu0 0.0
    %520 = vmatpush1.msra.mxu0 0.0
    %521 = vmatprep.subr.mxu0 0.0
    %522 = vmatpush1.msra.mxu0 0.0
    %523 = vmatprep.subr.mxu0 0.0
    %524 = vmatpush1.msra.mxu0 0.0
    %525 = vmatprep.subr.mxu0 0.0
    %526 = vmatpush1.msra.mxu0 0.0
    %527 = vmatprep.subr.mxu0 0.0
    %528 = vmatpush1.msra.mxu0 0.0
    %529 = vmatprep.subr.mxu0 0.0
    %530 = vmatpush1.msra.mxu0 0.0
    %531 = vmatprep.subr.mxu0 0.0
    %532 = vmatpush1.msra.mxu0 0.0
    %533 = vmatprep.subr.mxu0 0.0
    %534 = vmatpush1.msra.mxu0 0.0
    %535 = vmatprep.subr.mxu0 0.0
    %536 = vmatpush1.msra.mxu0 0.0
    %537 = vmatprep.subr.mxu0 0.0
    %538 = vmatpush1.msra.mxu0 0.0
    %539 = vmatprep.subr.mxu0 0.0
    %540 = vmatpush1.msra.mxu0 0.0
    %541 = vmatprep.subr.mxu0 0.0
    %542 = vmatpush1.msra.mxu0 0.0
    %543 = vmatprep.subr.mxu0 0.0
    %544 = vmatpush1.msra.mxu0 0.0
    %545 = vmatprep.subr.mxu0 0.0
    %546 = vmatpush1.msra.mxu0 0.0
    %547 = vmatprep.subr.mxu0 0.0
    %548 = vmatpush1.msra.mxu0 0.0
    %549 = vmatprep.subr.mxu0 0.0
    %550 = vmatpush1.msra.mxu0 0.0
    %551 = vmatprep.subr.mxu0 0.0
    %552 = vmatpush1.msra.mxu0 0.0
    %553 = vmatprep.subr.mxu0 0.0
    %554 = vmatpush1.msra.mxu0 0.0
    %555 = vmatprep.subr.mxu0 0.0
    %556 = vmatpush1.msra.mxu0 0.0
    %557 = vmatprep.subr.mxu0 0.0
    %558 = vmatpush1.msra.mxu0 0.0
    %559 = vmatprep.subr.mxu0 0.0
    %560 = vmatpush1.msra.mxu0 0.0
    %561 = vmatprep.subr.mxu0 0.0
    %562 = vmatpush1.msra.mxu0 0.0
    %563 = vmatprep.subr.mxu0 0.0
    %564 = vmatpush1.msra.mxu0 0.0
    %565 = vmatprep.subr.mxu0 0.0
    %566 = vmatpush1.msra.mxu0 0.0
    %567 = vmatprep.mubr.f32.mxu0 0.0
    %568 = vmatmul.mubr.f32.gmra.mrb[0].mxu0 %v498
    %v569 = vpop.f32.mrb[0].mxu0
    %v570 = vadd.f32 %v492, %v569
    %v571 = vpop.f32.mrb[0].mxu0
    %572 = vmatprep.mubr.f32.mxu0 0.0
    %573 = vmatmul.mubr.f32.gmra.mrb[0].mxu0 %v501
    %v574 = vpop.f32.mrb[0].mxu0
    %v575 = vadd.f32 %v494, %v574
    %v576 = vpop.f32.mrb[0].mxu0
    %577 = vdwg.mxu0
    %580 = vrot.lane.b32.xlu0 %v243, 96
    %v581 = vpop.permute.xlu0 %580
    %582 = vrot.lane.b32.xlu0 %v244, 96
    %v583 = vpop.permute.xlu0 %582
    %v587 = vsel %vm287, %v388, 0
    %v590 = vsel %vm287, %v389, 0
    %592 = vmatprep.subr.mxu0 0.0
    %593 = vmatpush1.msra.mxu0 %v243
    %594 = vmatprep.subr.mxu0 0.0
    %595 = vmatpush1.msra.mxu0 %v244
    %596 = vmatprep.subr.mxu0 0.0
    %597 = vmatpush1.msra.mxu0 0.0
    %598 = vmatprep.subr.mxu0 0.0
    %599 = vmatpush1.msra.mxu0 0.0
    %600 = vmatprep.subr.mxu0 0.0
    %601 = vmatpush1.msra.mxu0 0.0
    %602 = vmatprep.subr.mxu0 0.0
    %603 = vmatpush1.msra.mxu0 0.0
    %604 = vmatprep.subr.mxu0 0.0
    %605 = vmatpush1.msra.mxu0 0.0
    %606 = vmatprep.subr.mxu0 0.0
    %607 = vmatpush1.msra.mxu0 0.0
    %608 = vmatprep.subr.mxu0 0.0
    %609 = vmatpush1.msra.mxu0 0.0
    %610 = vmatprep.subr.mxu0 0.0
    %611 = vmatpush1.msra.mxu0 0.0
    %612 = vmatprep.subr.mxu0 0.0
    %613 = vmatpush1.msra.mxu0 0.0
    %614 = vmatprep.subr.mxu0 0.0
    %615 = vmatpush1.msra.mxu0 0.0
    %616 = vmatprep.subr.mxu0 0.0
    %617 = vmatpush1.msra.mxu0 0.0
    %618 = vmatprep.subr.mxu0 0.0
    %619 = vmatpush1.msra.mxu0 0.0
    %620 = vmatprep.subr.mxu0 0.0
    %621 = vmatpush1.msra.mxu0 0.0
    %622 = vmatprep.subr.mxu0 0.0
    %623 = vmatpush1.msra.mxu0 0.0
    %624 = vmatprep.subr.mxu0 0.0
    %625 = vmatpush1.msra.mxu0 0.0
    %626 = vmatprep.subr.mxu0 0.0
    %627 = vmatpush1.msra.mxu0 0.0
    %628 = vmatprep.subr.mxu0 0.0
    %629 = vmatpush1.msra.mxu0 0.0
    %630 = vmatprep.subr.mxu0 0.0
    %631 = vmatpush1.msra.mxu0 0.0
    %632 = vmatprep.subr.mxu0 0.0
    %633 = vmatpush1.msra.mxu0 0.0
    %634 = vmatprep.subr.mxu0 0.0
    %635 = vmatpush1.msra.mxu0 0.0
    %636 = vmatprep.subr.mxu0 0.0
    %637 = vmatpush1.msra.mxu0 0.0
    %638 = vmatprep.subr.mxu0 0.0
    %639 = vmatpush1.msra.mxu0 0.0
    %640 = vmatprep.subr.mxu0 0.0
    %641 = vmatpush1.msra.mxu0 0.0
    %642 = vmatprep.subr.mxu0 0.0
    %643 = vmatpush1.msra.mxu0 0.0
    %644 = vmatprep.subr.mxu0 0.0
    %645 = vmatpush1.msra.mxu0 0.0
    %646 = vmatprep.subr.mxu0 0.0
    %647 = vmatpush1.msra.mxu0 0.0
    %648 = vmatprep.subr.mxu0 0.0
    %649 = vmatpush1.msra.mxu0 0.0
    %650 = vmatprep.subr.mxu0 0.0
    %651 = vmatpush1.msra.mxu0 0.0
    %652 = vmatprep.subr.mxu0 0.0
    %653 = vmatpush1.msra.mxu0 0.0
    %654 = vmatprep.subr.mxu0 0.0
    %655 = vmatpush1.msra.mxu0 0.0
    %656 = vmatprep.mubr.f32.mxu0 0.0
    %657 = vmatmul.mubr.f32.gmra.mrb[0].mxu0 %v587
    %v658 = vpop.f32.mrb[0].mxu0
    %v659 = vadd.f32 %v581, %v658
    %v660 = vpop.f32.mrb[0].mxu0
    %661 = vmatprep.mubr.f32.mxu0 0.0
    %662 = vmatmul.mubr.f32.gmra.mrb[0].mxu0 %v590
    %v663 = vpop.f32.mrb[0].mxu0
    %v664 = vadd.f32 %v583, %v663
    %v665 = vpop.f32.mrb[0].mxu0
    %666 = vdwg.mxu0
    %669 = vrot.lane.b32.xlu0 %v245, 96
    %v670 = vpop.permute.xlu0 %669
    %671 = vrot.lane.b32.xlu0 %v246, 96
    %v672 = vpop.permute.xlu0 %671
    %v676 = vsel %vm287, %v390, 0
    %v679 = vsel %vm287, %v391, 0
    %681 = vmatprep.subr.mxu0 0.0
    %682 = vmatpush1.msra.mxu0 %v245
    %683 = vmatprep.subr.mxu0 0.0
    %684 = vmatpush1.msra.mxu0 %v246
    %685 = vmatprep.subr.mxu0 0.0
    %686 = vmatpush1.msra.mxu0 0.0
    %687 = vmatprep.subr.mxu0 0.0
    %688 = vmatpush1.msra.mxu0 0.0
    %689 = vmatprep.subr.mxu0 0.0
    %690 = vmatpush1.msra.mxu0 0.0
    %691 = vmatprep.subr.mxu0 0.0
    %692 = vmatpush1.msra.mxu0 0.0
    %693 = vmatprep.subr.mxu0 0.0
    %694 = vmatpush1.msra.mxu0 0.0
    %695 = vmatprep.subr.mxu0 0.0
    %696 = vmatpush1.msra.mxu0 0.0
    %697 = vmatprep.subr.mxu0 0.0
    %698 = vmatpush1.msra.mxu0 0.0
    %699 = vmatprep.subr.mxu0 0.0
    %700 = vmatpush1.msra.mxu0 0.0
    %701 = vmatprep.subr.mxu0 0.0
    %702 = vmatpush1.msra.mxu0 0.0
    %703 = vmatprep.subr.mxu0 0.0
    %704 = vmatpush1.msra.mxu0 0.0
    %705 = vmatprep.subr.mxu0 0.0
    %706 = vmatpush1.msra.mxu0 0.0
    %707 = vmatprep.subr.mxu0 0.0
    %708 = vmatpush1.msra.mxu0 0.0
    %709 = vmatprep.subr.mxu0 0.0
    %710 = vmatpush1.msra.mxu0 0.0
    %711 = vmatprep.subr.mxu0 0.0
    %712 = vmatpush1.msra.mxu0 0.0
    %713 = vmatprep.subr.mxu0 0.0
    %714 = vmatpush1.msra.mxu0 0.0
    %715 = vmatprep.subr.mxu0 0.0
    %716 = vmatpush1.msra.mxu0 0.0
    %717 = vmatprep.subr.mxu0 0.0
    %718 = vmatpush1.msra.mxu0 0.0
    %719 = vmatprep.subr.mxu0 0.0
    %720 = vmatpush1.msra.mxu0 0.0
    %721 = vmatprep.subr.mxu0 0.0
    %722 = vmatpush1.msra.mxu0 0.0
    %723 = vmatprep.subr.mxu0 0.0
    %724 = vmatpush1.msra.mxu0 0.0
    %725 = vmatprep.subr.mxu0 0.0
    %726 = vmatpush1.msra.mxu0 0.0
    %727 = vmatprep.subr.mxu0 0.0
    %728 = vmatpush1.msra.mxu0 0.0
    %729 = vmatprep.subr.mxu0 0.0
    %730 = vmatpush1.msra.mxu0 0.0
    %731 = vmatprep.subr.mxu0 0.0
    %732 = vmatpush1.msra.mxu0 0.0
    %733 = vmatprep.subr.mxu0 0.0
    %734 = vmatpush1.msra.mxu0 0.0
    %735 = vmatprep.subr.mxu0 0.0
    %736 = vmatpush1.msra.mxu0 0.0
    %737 = vmatprep.subr.mxu0 0.0
    %738 = vmatpush1.msra.mxu0 0.0
    %739 = vmatprep.subr.mxu0 0.0
    %740 = vmatpush1.msra.mxu0 0.0
    %741 = vmatprep.subr.mxu0 0.0
    %742 = vmatpush1.msra.mxu0 0.0
    %743 = vmatprep.subr.mxu0 0.0
    %744 = vmatpush1.msra.mxu0 0.0
    %745 = vmatprep.mubr.f32.mxu0 0.0
    %746 = vmatmul.mubr.f32.gmra.mrb[0].mxu0 %v676
    %v747 = vpop.f32.mrb[0].mxu0
    %v748 = vadd.f32 %v670, %v747
    %v749 = vpop.f32.mrb[0].mxu0
    %750 = vmatprep.mubr.f32.mxu0 0.0
    %751 = vmatmul.mubr.f32.gmra.mrb[0].mxu0 %v679
    %v752 = vpop.f32.mrb[0].mxu0
    %v753 = vadd.f32 %v672, %v752
    %v754 = vpop.f32.mrb[0].mxu0
    %755 = vdwg.mxu0
    %758 = vrot.lane.b32.xlu0 %v247, 96
    %v759 = vpop.permute.xlu0 %758
    %760 = vrot.lane.b32.xlu0 %v248, 96
    %v761 = vpop.permute.xlu0 %760
    %v765 = vsel %vm287, %v392, 0
    %v768 = vsel %vm287, %v393, 0
    %770 = vmatprep.subr.mxu0 0.0
    %771 = vmatpush1.msra.mxu0 %v247
    %772 = vmatprep.subr.mxu0 0.0
    %773 = vmatpush1.msra.mxu0 %v248
    %774 = vmatprep.subr.mxu0 0.0
    %775 = vmatpush1.msra.mxu0 0.0
    %776 = vmatprep.subr.mxu0 0.0
    %777 = vmatpush1.msra.mxu0 0.0
    %778 = vmatprep.subr.mxu0 0.0
    %779 = vmatpush1.msra.mxu0 0.0
    %780 = vmatprep.subr.mxu0 0.0
    %781 = vmatpush1.msra.mxu0 0.0
    %782 = vmatprep.subr.mxu0 0.0
    %783 = vmatpush1.msra.mxu0 0.0
    %784 = vmatprep.subr.mxu0 0.0
    %785 = vmatpush1.msra.mxu0 0.0
    %786 = vmatprep.subr.mxu0 0.0
    %787 = vmatpush1.msra.mxu0 0.0
    %788 = vmatprep.subr.mxu0 0.0
    %789 = vmatpush1.msra.mxu0 0.0
    %790 = vmatprep.subr.mxu0 0.0
    %791 = vmatpush1.msra.mxu0 0.0
    %792 = vmatprep.subr.mxu0 0.0
    %793 = vmatpush1.msra.mxu0 0.0
    %794 = vmatprep.subr.mxu0 0.0
    %795 = vmatpush1.msra.mxu0 0.0
    %796 = vmatprep.subr.mxu0 0.0
    %797 = vmatpush1.msra.mxu0 0.0
    %798 = vmatprep.subr.mxu0 0.0
    %799 = vmatpush1.msra.mxu0 0.0
    %800 = vmatprep.subr.mxu0 0.0
    %801 = vmatpush1.msra.mxu0 0.0
    %802 = vmatprep.subr.mxu0 0.0
    %803 = vmatpush1.msra.mxu0 0.0
    %804 = vmatprep.subr.mxu0 0.0
    %805 = vmatpush1.msra.mxu0 0.0
    %806 = vmatprep.subr.mxu0 0.0
    %807 = vmatpush1.msra.mxu0 0.0
    %808 = vmatprep.subr.mxu0 0.0
    %809 = vmatpush1.msra.mxu0 0.0
    %810 = vmatprep.subr.mxu0 0.0
    %811 = vmatpush1.msra.mxu0 0.0
    %812 = vmatprep.subr.mxu0 0.0
    %813 = vmatpush1.msra.mxu0 0.0
    %814 = vmatprep.subr.mxu0 0.0
    %815 = vmatpush1.msra.mxu0 0.0
    %816 = vmatprep.subr.mxu0 0.0
    %817 = vmatpush1.msra.mxu0 0.0
    %818 = vmatprep.subr.mxu0 0.0
    %819 = vmatpush1.msra.mxu0 0.0
    %820 = vmatprep.subr.mxu0 0.0
    %821 = vmatpush1.msra.mxu0 0.0
    %822 = vmatprep.subr.mxu0 0.0
    %823 = vmatpush1.msra.mxu0 0.0
    %824 = vmatprep.subr.mxu0 0.0
    %825 = vmatpush1.msra.mxu0 0.0
    %826 = vmatprep.subr.mxu0 0.0
    %827 = vmatpush1.msra.mxu0 0.0
    %828 = vmatprep.subr.mxu0 0.0
    %829 = vmatpush1.msra.mxu0 0.0
    %830 = vmatprep.subr.mxu0 0.0
    %831 = vmatpush1.msra.mxu0 0.0
    %832 = vmatprep.subr.mxu0 0.0
    %833 = vmatpush1.msra.mxu0 0.0
    %834 = vmatprep.mubr.f32.mxu0 0.0
    %835 = vmatmul.mubr.f32.gmra.mrb[0].mxu0 %v765
    %v836 = vpop.f32.mrb[0].mxu0
    %v837 = vadd.f32 %v759, %v836
    %v838 = vpop.f32.mrb[0].mxu0
    %839 = vmatprep.mubr.f32.mxu0 0.0
    %840 = vmatmul.mubr.f32.gmra.mrb[0].mxu0 %v768
    %v841 = vpop.f32.mrb[0].mxu0
    %v842 = vadd.f32 %v761, %v841
    %v843 = vpop.f32.mrb[0].mxu0
    %844 = vdwg.mxu0
    %847 = vrot.lane.b32.xlu0 %v249, 96
    %v848 = vpop.permute.xlu0 %847
    %849 = vrot.lane.b32.xlu0 %v250, 96
    %v850 = vpop.permute.xlu0 %849
    %v854 = vsel %vm287, %v394, 0
    %v857 = vsel %vm287, %v395, 0
    %859 = vmatprep.subr.mxu0 0.0
    %860 = vmatpush1.msra.mxu0 %v249
    %861 = vmatprep.subr.mxu0 0.0
    %862 = vmatpush1.msra.mxu0 %v250
    %863 = vmatprep.subr.mxu0 0.0
    %864 = vmatpush1.msra.mxu0 0.0
    %865 = vmatprep.subr.mxu0 0.0
    %866 = vmatpush1.msra.mxu0 0.0
    %867 = vmatprep.subr.mxu0 0.0
    %868 = vmatpush1.msra.mxu0 0.0
    %869 = vmatprep.subr.mxu0 0.0
    %870 = vmatpush1.msra.mxu0 0.0
    %871 = vmatprep.subr.mxu0 0.0
    %872 = vmatpush1.msra.mxu0 0.0
    %873 = vmatprep.subr.mxu0 0.0
    %874 = vmatpush1.msra.mxu0 0.0
    %875 = vmatprep.subr.mxu0 0.0
    %876 = vmatpush1.msra.mxu0 0.0
    %877 = vmatprep.subr.mxu0 0.0
    %878 = vmatpush1.msra.mxu0 0.0
    %879 = vmatprep.subr.mxu0 0.0
    %880 = vmatpush1.msra.mxu0 0.0
    %881 = vmatprep.subr.mxu0 0.0
    %882 = vmatpush1.msra.mxu0 0.0
    %883 = vmatprep.subr.mxu0 0.0
    %884 = vmatpush1.msra.mxu0 0.0
    %885 = vmatprep.subr.mxu0 0.0
    %886 = vmatpush1.msra.mxu0 0.0
    %887 = vmatprep.subr.mxu0 0.0
    %888 = vmatpush1.msra.mxu0 0.0
    %889 = vmatprep.subr.mxu0 0.0
    %890 = vmatpush1.msra.mxu0 0.0
    %891 = vmatprep.subr.mxu0 0.0
    %892 = vmatpush1.msra.mxu0 0.0
    %893 = vmatprep.subr.mxu0 0.0
    %894 = vmatpush1.msra.mxu0 0.0
    %895 = vmatprep.subr.mxu0 0.0
    %896 = vmatpush1.msra.mxu0 0.0
    %897 = vmatprep.subr.mxu0 0.0
    %898 = vmatpush1.msra.mxu0 0.0
    %899 = vmatprep.subr.mxu0 0.0
    %900 = vmatpush1.msra.mxu0 0.0
    %901 = vmatprep.subr.mxu0 0.0
    %902 = vmatpush1.msra.mxu0 0.0
    %903 = vmatprep.subr.mxu0 0.0
    %904 = vmatpush1.msra.mxu0 0.0
    %905 = vmatprep.subr.mxu0 0.0
    %906 = vmatpush1.msra.mxu0 0.0
    %907 = vmatprep.subr.mxu0 0.0
    %908 = vmatpush1.msra.mxu0 0.0
    %909 = vmatprep.subr.mxu0 0.0
    %910 = vmatpush1.msra.mxu0 0.0
    %911 = vmatprep.subr.mxu0 0.0
    %912 = vmatpush1.msra.mxu0 0.0
    %913 = vmatprep.subr.mxu0 0.0
    %914 = vmatpush1.msra.mxu0 0.0
    %915 = vmatprep.subr.mxu0 0.0
    %916 = vmatpush1.msra.mxu0 0.0
    %917 = vmatprep.subr.mxu0 0.0
    %918 = vmatpush1.msra.mxu0 0.0
    %919 = vmatprep.subr.mxu0 0.0
    %920 = vmatpush1.msra.mxu0 0.0
    %921 = vmatprep.subr.mxu0 0.0
    %922 = vmatpush1.msra.mxu0 0.0
    %923 = vmatprep.mubr.f32.mxu0 0.0
    %924 = vmatmul.mubr.f32.gmra.mrb[0].mxu0 %v854
    %v925 = vpop.f32.mrb[0].mxu0
    %v926 = vadd.f32 %v848, %v925
    %v927 = vpop.f32.mrb[0].mxu0
    %928 = vmatprep.mubr.f32.mxu0 0.0
    %929 = vmatmul.mubr.f32.gmra.mrb[0].mxu0 %v857
    %v930 = vpop.f32.mrb[0].mxu0
    %v931 = vadd.f32 %v850, %v930
    %v932 = vpop.f32.mrb[0].mxu0
    %933 = vdwg.mxu0
    %936 = vrot.lane.b32.xlu0 %v251, 96
    %v937 = vpop.permute.xlu0 %936
    %938 = vrot.lane.b32.xlu0 %v252, 96
    %v939 = vpop.permute.xlu0 %938
    %v943 = vsel %vm287, %v396, 0
    %v946 = vsel %vm287, %v397, 0
    %948 = vmatprep.subr.mxu0 0.0
    %949 = vmatpush1.msra.mxu0 %v251
    %950 = vmatprep.subr.mxu0 0.0
    %951 = vmatpush1.msra.mxu0 %v252
    %952 = vmatprep.subr.mxu0 0.0
    %953 = vmatpush1.msra.mxu0 0.0
    %954 = vmatprep.subr.mxu0 0.0
    %955 = vmatpush1.msra.mxu0 0.0
    %956 = vmatprep.subr.mxu0 0.0
    %957 = vmatpush1.msra.mxu0 0.0
    %958 = vmatprep.subr.mxu0 0.0
    %959 = vmatpush1.msra.mxu0 0.0
    %960 = vmatprep.subr.mxu0 0.0
    %961 = vmatpush1.msra.mxu0 0.0
    %962 = vmatprep.subr.mxu0 0.0
    %963 = vmatpush1.msra.mxu0 0.0
    %964 = vmatprep.subr.mxu0 0.0
    %965 = vmatpush1.msra.mxu0 0.0
    %966 = vmatprep.subr.mxu0 0.0
    %967 = vmatpush1.msra.mxu0 0.0
    %968 = vmatprep.subr.mxu0 0.0
    %969 = vmatpush1.msra.mxu0 0.0
    %970 = vmatprep.subr.mxu0 0.0
    %971 = vmatpush1.msra.mxu0 0.0
    %972 = vmatprep.subr.mxu0 0.0
    %973 = vmatpush1.msra.mxu0 0.0
    %974 = vmatprep.subr.mxu0 0.0
    %975 = vmatpush1.msra.mxu0 0.0
    %976 = vmatprep.subr.mxu0 0.0
    %977 = vmatpush1.msra.mxu0 0.0
    %978 = vmatprep.subr.mxu0 0.0
    %979 = vmatpush1.msra.mxu0 0.0
    %980 = vmatprep.subr.mxu0 0.0
    %981 = vmatpush1.msra.mxu0 0.0
    %982 = vmatprep.subr.mxu0 0.0
    %983 = vmatpush1.msra.mxu0 0.0
    %984 = vmatprep.subr.mxu0 0.0
    %985 = vmatpush1.msra.mxu0 0.0
    %986 = vmatprep.subr.mxu0 0.0
    %987 = vmatpush1.msra.mxu0 0.0
    %988 = vmatprep.subr.mxu0 0.0
    %989 = vmatpush1.msra.mxu0 0.0
    %990 = vmatprep.subr.mxu0 0.0
    %991 = vmatpush1.msra.mxu0 0.0
    %992 = vmatprep.subr.mxu0 0.0
    %993 = vmatpush1.msra.mxu0 0.0
    %994 = vmatprep.subr.mxu0 0.0
    %995 = vmatpush1.msra.mxu0 0.0
    %996 = vmatprep.subr.mxu0 0.0
    %997 = vmatpush1.msra.mxu0 0.0
    %998 = vmatprep.subr.mxu0 0.0
    %999 = vmatpush1.msra.mxu0 0.0
    %1000 = vmatprep.subr.mxu0 0.0
    %1001 = vmatpush1.msra.mxu0 0.0
    %1002 = vmatprep.subr.mxu0 0.0
    %1003 = vmatpush1.msra.mxu0 0.0
    %1004 = vmatprep.subr.mxu0 0.0
    %1005 = vmatpush1.msra.mxu0 0.0
    %1006 = vmatprep.subr.mxu0 0.0
    %1007 = vmatpush1.msra.mxu0 0.0
    %1008 = vmatprep.subr.mxu0 0.0
    %1009 = vmatpush1.msra.mxu0 0.0
    %1010 = vmatprep.subr.mxu0 0.0
    %1011 = vmatpush1.msra.mxu0 0.0
    %1012 = vmatprep.mubr.f32.mxu0 0.0
    %1013 = vmatmul.mubr.f32.gmra.mrb[0].mxu0 %v943
    %v1014 = vpop.f32.mrb[0].mxu0
    %v1015 = vadd.f32 %v937, %v1014
    %v1016 = vpop.f32.mrb[0].mxu0
    %1017 = vmatprep.mubr.f32.mxu0 0.0
    %1018 = vmatmul.mubr.f32.gmra.mrb[0].mxu0 %v946
    %v1019 = vpop.f32.mrb[0].mxu0
    %v1020 = vadd.f32 %v939, %v1019
    %v1021 = vpop.f32.mrb[0].mxu0
    %1022 = vdwg.mxu0
    %1025 = vrot.lane.b32.xlu0 %v253, 96
    %v1026 = vpop.permute.xlu0 %1025
    %1027 = vrot.lane.b32.xlu0 %v254, 96
    %v1028 = vpop.permute.xlu0 %1027
    %v1032 = vsel %vm287, %v398, 0
    %v1035 = vsel %vm287, %v399, 0
    %1037 = vmatprep.subr.mxu0 0.0
    %1038 = vmatpush1.msra.mxu0 %v253
    %1039 = vmatprep.subr.mxu0 0.0
    %1040 = vmatpush1.msra.mxu0 %v254
    %1041 = vmatprep.subr.mxu0 0.0
    %1042 = vmatpush1.msra.mxu0 0.0
    %1043 = vmatprep.subr.mxu0 0.0
    %1044 = vmatpush1.msra.mxu0 0.0
    %1045 = vmatprep.subr.mxu0 0.0
    %1046 = vmatpush1.msra.mxu0 0.0
    %1047 = vmatprep.subr.mxu0 0.0
    %1048 = vmatpush1.msra.mxu0 0.0
    %1049 = vmatprep.subr.mxu0 0.0
    %1050 = vmatpush1.msra.mxu0 0.0
    %1051 = vmatprep.subr.mxu0 0.0
    %1052 = vmatpush1.msra.mxu0 0.0
    %1053 = vmatprep.subr.mxu0 0.0
    %1054 = vmatpush1.msra.mxu0 0.0
    %1055 = vmatprep.subr.mxu0 0.0
    %1056 = vmatpush1.msra.mxu0 0.0
    %1057 = vmatprep.subr.mxu0 0.0
    %1058 = vmatpush1.msra.mxu0 0.0
    %1059 = vmatprep.subr.mxu0 0.0
    %1060 = vmatpush1.msra.mxu0 0.0
    %1061 = vmatprep.subr.mxu0 0.0
    %1062 = vmatpush1.msra.mxu0 0.0
    %1063 = vmatprep.subr.mxu0 0.0
    %1064 = vmatpush1.msra.mxu0 0.0
    %1065 = vmatprep.subr.mxu0 0.0
    %1066 = vmatpush1.msra.mxu0 0.0
    %1067 = vmatprep.subr.mxu0 0.0
    %1068 = vmatpush1.msra.mxu0 0.0
    %1069 = vmatprep.subr.mxu0 0.0
    %1070 = vmatpush1.msra.mxu0 0.0
    %1071 = vmatprep.subr.mxu0 0.0
    %1072 = vmatpush1.msra.mxu0 0.0
    %1073 = vmatprep.subr.mxu0 0.0
    %1074 = vmatpush1.msra.mxu0 0.0
    %1075 = vmatprep.subr.mxu0 0.0
    %1076 = vmatpush1.msra.mxu0 0.0
    %1077 = vmatprep.subr.mxu0 0.0
    %1078 = vmatpush1.msra.mxu0 0.0
    %1079 = vmatprep.subr.mxu0 0.0
    %1080 = vmatpush1.msra.mxu0 0.0
    %1081 = vmatprep.subr.mxu0 0.0
    %1082 = vmatpush1.msra.mxu0 0.0
    %1083 = vmatprep.subr.mxu0 0.0
    %1084 = vmatpush1.msra.mxu0 0.0
    %1085 = vmatprep.subr.mxu0 0.0
    %1086 = vmatpush1.msra.mxu0 0.0
    %1087 = vmatprep.subr.mxu0 0.0
    %1088 = vmatpush1.msra.mxu0 0.0
    %1089 = vmatprep.subr.mxu0 0.0
    %1090 = vmatpush1.msra.mxu0 0.0
    %1091 = vmatprep.subr.mxu0 0.0
    %1092 = vmatpush1.msra.mxu0 0.0
    %1093 = vmatprep.subr.mxu0 0.0
    %1094 = vmatpush1.msra.mxu0 0.0
    %1095 = vmatprep.subr.mxu0 0.0
    %1096 = vmatpush1.msra.mxu0 0.0
    %1097 = vmatprep.subr.mxu0 0.0
    %1098 = vmatpush1.msra.mxu0 0.0
    %1099 = vmatprep.subr.mxu0 0.0
    %1100 = vmatpush1.msra.mxu0 0.0
    %1101 = vmatprep.mubr.f32.mxu0 0.0
    %1102 = vmatmul.mubr.f32.gmra.mrb[0].mxu0 %v1032
    %v1103 = vpop.f32.mrb[0].mxu0
    %v1104 = vadd.f32 %v1026, %v1103
    %v1105 = vpop.f32.mrb[0].mxu0
    %1106 = vmatprep.mubr.f32.mxu0 0.0
    %1107 = vmatmul.mubr.f32.gmra.mrb[0].mxu0 %v1035
    %v1108 = vpop.f32.mrb[0].mxu0
    %v1109 = vadd.f32 %v1028, %v1108
    %v1110 = vpop.f32.mrb[0].mxu0
    %1111 = vdwg.mxu0
    %v1112 = vcombine.low %v481, %v659
    %v1113 = vcombine.high %v481, %v659
    %v1115 = vunpack.c.l.s4 1983009808
    %v1116 = vunpack.c.0.s8 %v1115
    %v1117 = vlaneseq
    %v1118 = vshrl.u32 %v1117, 7
    %v1119 = vsub.s32 %v1116, %v1118
    %v1120 = vrot.slane %v1112, %v1119
    %v1122 = vunpack.c.l.s4 1983009808
    %v1123 = vunpack.c.0.s8 %v1122
    %v1124 = vlaneseq
    %v1125 = vshrl.u32 %v1124, 7
    %v1126 = vsub.s32 %v1123, %v1125
    %v1127 = vrot.slane %v1113, %v1126
    %v1128 = vcombine.low %v570, %v748
    %v1129 = vcombine.high %v570, %v748
    %v1131 = vunpack.c.l.s4 1983009808
    %v1132 = vunpack.c.0.s8 %v1131
    %v1133 = vlaneseq
    %v1134 = vshrl.u32 %v1133, 7
    %v1135 = vsub.s32 %v1132, %v1134
    %v1136 = vrot.slane %v1128, %v1135
    %v1138 = vunpack.c.l.s4 1983009808
    %v1139 = vunpack.c.0.s8 %v1138
    %v1140 = vlaneseq
    %v1141 = vshrl.u32 %v1140, 7
    %v1142 = vsub.s32 %v1139, %v1141
    %v1143 = vrot.slane %v1129, %v1142
    %v1144 = vcombine.low %v837, %v1015
    %v1145 = vcombine.high %v837, %v1015
    %v1147 = vunpack.c.l.s4 1983009808
    %v1148 = vunpack.c.0.s8 %v1147
    %v1149 = vlaneseq
    %v1150 = vshrl.u32 %v1149, 7
    %v1151 = vsub.s32 %v1148, %v1150
    %v1152 = vrot.slane %v1144, %v1151
    %v1154 = vunpack.c.l.s4 1983009808
    %v1155 = vunpack.c.0.s8 %v1154
    %v1156 = vlaneseq
    %v1157 = vshrl.u32 %v1156, 7
    %v1158 = vsub.s32 %v1155, %v1157
    %v1159 = vrot.slane %v1145, %v1158
    %v1160 = vcombine.low %v926, %v1104
    %v1161 = vcombine.high %v926, %v1104
    %v1163 = vunpack.c.l.s4 1983009808
    %v1164 = vunpack.c.0.s8 %v1163
    %v1165 = vlaneseq
    %v1166 = vshrl.u32 %v1165, 7
    %v1167 = vsub.s32 %v1164, %v1166
    %v1168 = vrot.slane %v1160, %v1167
    %v1170 = vunpack.c.l.s4 1983009808
    %v1171 = vunpack.c.0.s8 %v1170
    %v1172 = vlaneseq
    %v1173 = vshrl.u32 %v1172, 7
    %v1174 = vsub.s32 %v1171, %v1173
    %v1175 = vrot.slane %v1161, %v1174
    %v1176 = vcombine.low %v1120, %v1136
    %v1177 = vcombine.high %v1120, %v1136
    %v1179 = vunpack.c.l.s4 1934713408
    %v1180 = vunpack.c.0.s8 %v1179
    %v1181 = vlaneseq
    %v1182 = vshrl.u32 %v1181, 7
    %v1183 = vsub.s32 %v1180, %v1182
    %v1184 = vrot.slane %v1176, %v1183
    %v1186 = vunpack.c.l.s4 1934713408
    %v1187 = vunpack.c.0.s8 %v1186
    %v1188 = vlaneseq
    %v1189 = vshrl.u32 %v1188, 7
    %v1190 = vsub.s32 %v1187, %v1189
    %v1191 = vrot.slane %v1177, %v1190
    %v1192 = vcombine.low %v1127, %v1143
    %v1193 = vcombine.high %v1127, %v1143
    %v1195 = vunpack.c.l.s4 1934713408
    %v1196 = vunpack.c.0.s8 %v1195
    %v1197 = vlaneseq
    %v1198 = vshrl.u32 %v1197, 7
    %v1199 = vsub.s32 %v1196, %v1198
    %v1200 = vrot.slane %v1192, %v1199
    %v1202 = vunpack.c.l.s4 1934713408
    %v1203 = vunpack.c.0.s8 %v1202
    %v1204 = vlaneseq
    %v1205 = vshrl.u32 %v1204, 7
    %v1206 = vsub.s32 %v1203, %v1205
    %v1207 = vrot.slane %v1193, %v1206
    %v1208 = vcombine.low %v1152, %v1168
    %v1209 = vcombine.high %v1152, %v1168
    %v1211 = vunpack.c.l.s4 1934713408
    %v1212 = vunpack.c.0.s8 %v1211
    %v1213 = vlaneseq
    %v1214 = vshrl.u32 %v1213, 7
    %v1215 = vsub.s32 %v1212, %v1214
    %v1216 = vrot.slane %v1208, %v1215
    %v1218 = vunpack.c.l.s4 1934713408
    %v1219 = vunpack.c.0.s8 %v1218
    %v1220 = vlaneseq
    %v1221 = vshrl.u32 %v1220, 7
    %v1222 = vsub.s32 %v1219, %v1221
    %v1223 = vrot.slane %v1209, %v1222
    %v1224 = vcombine.low %v1159, %v1175
    %v1225 = vcombine.high %v1159, %v1175
    %v1227 = vunpack.c.l.s4 1934713408
    %v1228 = vunpack.c.0.s8 %v1227
    %v1229 = vlaneseq
    %v1230 = vshrl.u32 %v1229, 7
    %v1231 = vsub.s32 %v1228, %v1230
    %v1232 = vrot.slane %v1224, %v1231
    %v1234 = vunpack.c.l.s4 1934713408
    %v1235 = vunpack.c.0.s8 %v1234
    %v1236 = vlaneseq
    %v1237 = vshrl.u32 %v1236, 7
    %v1238 = vsub.s32 %v1235, %v1237
    %v1239 = vrot.slane %v1225, %v1238
    %v1240 = vcombine.low %v1184, %v1216
    %v1241 = vcombine.high %v1184, %v1216
    %v1242 = vcombine.low %v1191, %v1223
    %v1243 = vcombine.high %v1191, %v1223
    %v1244 = vcombine.low %v1200, %v1232
    %v1245 = vcombine.high %v1200, %v1232
    %v1246 = vcombine.low %v1207, %v1239
    %v1247 = vcombine.high %v1207, %v1239
    %v1248 = vcombine.low %v486, %v664
    %v1249 = vcombine.high %v486, %v664
    %v1251 = vunpack.c.l.s4 1983009808
    %v1252 = vunpack.c.0.s8 %v1251
    %v1253 = vlaneseq
    %v1254 = vshrl.u32 %v1253, 7
    %v1255 = vsub.s32 %v1252, %v1254
    %v1256 = vrot.slane %v1248, %v1255
    %v1258 = vunpack.c.l.s4 1983009808
    %v1259 = vunpack.c.0.s8 %v1258
    %v1260 = vlaneseq
    %v1261 = vshrl.u32 %v1260, 7
    %v1262 = vsub.s32 %v1259, %v1261
    %v1263 = vrot.slane %v1249, %v1262
    %v1264 = vcombine.low %v575, %v753
    %v1265 = vcombine.high %v575, %v753
    %v1267 = vunpack.c.l.s4 1983009808
    %v1268 = vunpack.c.0.s8 %v1267
    %v1269 = vlaneseq
    %v1270 = vshrl.u32 %v1269, 7
    %v1271 = vsub.s32 %v1268, %v1270
    %v1272 = vrot.slane %v1264, %v1271
    %v1274 = vunpack.c.l.s4 1983009808
    %v1275 = vunpack.c.0.s8 %v1274
    %v1276 = vlaneseq
    %v1277 = vshrl.u32 %v1276, 7
    %v1278 = vsub.s32 %v1275, %v1277
    %v1279 = vrot.slane %v1265, %v1278
    %v1280 = vcombine.low %v842, %v1020
    %v1281 = vcombine.high %v842, %v1020
    %v1283 = vunpack.c.l.s4 1983009808
    %v1284 = vunpack.c.0.s8 %v1283
    %v1285 = vlaneseq
    %v1286 = vshrl.u32 %v1285, 7
    %v1287 = vsub.s32 %v1284, %v1286
    %v1288 = vrot.slane %v1280, %v1287
    %v1290 = vunpack.c.l.s4 1983009808
    %v1291 = vunpack.c.0.s8 %v1290
    %v1292 = vlaneseq
    %v1293 = vshrl.u32 %v1292, 7
    %v1294 = vsub.s32 %v1291, %v1293
    %v1295 = vrot.slane %v1281, %v1294
    %v1296 = vcombine.low %v931, %v1109
    %v1297 = vcombine.high %v931, %v1109
    %v1299 = vunpack.c.l.s4 1983009808
    %v1300 = vunpack.c.0.s8 %v1299
    %v1301 = vlaneseq
    %v1302 = vshrl.u32 %v1301, 7
    %v1303 = vsub.s32 %v1300, %v1302
    %v1304 = vrot.slane %v1296, %v1303
    %v1306 = vunpack.c.l.s4 1983009808
    %v1307 = vunpack.c.0.s8 %v1306
    %v1308 = vlaneseq
    %v1309 = vshrl.u32 %v1308, 7
    %v1310 = vsub.s32 %v1307, %v1309
    %v1311 = vrot.slane %v1297, %v1310
    %v1312 = vcombine.low %v1256, %v1272
    %v1313 = vcombine.high %v1256, %v1272
    %v1315 = vunpack.c.l.s4 1934713408
    %v1316 = vunpack.c.0.s8 %v1315
    %v1317 = vlaneseq
    %v1318 = vshrl.u32 %v1317, 7
    %v1319 = vsub.s32 %v1316, %v1318
    %v1320 = vrot.slane %v1312, %v1319
    %v1322 = vunpack.c.l.s4 1934713408
    %v1323 = vunpack.c.0.s8 %v1322
    %v1324 = vlaneseq
    %v1325 = vshrl.u32 %v1324, 7
    %v1326 = vsub.s32 %v1323, %v1325
    %v1327 = vrot.slane %v1313, %v1326
    %v1328 = vcombine.low %v1263, %v1279
    %v1329 = vcombine.high %v1263, %v1279
    %v1331 = vunpack.c.l.s4 1934713408
    %v1332 = vunpack.c.0.s8 %v1331
    %v1333 = vlaneseq
    %v1334 = vshrl.u32 %v1333, 7
    %v1335 = vsub.s32 %v1332, %v1334
    %v1336 = vrot.slane %v1328, %v1335
    %v1338 = vunpack.c.l.s4 1934713408
    %v1339 = vunpack.c.0.s8 %v1338
    %v1340 = vlaneseq
    %v1341 = vshrl.u32 %v1340, 7
    %v1342 = vsub.s32 %v1339, %v1341
    %v1343 = vrot.slane %v1329, %v1342
    %v1344 = vcombine.low %v1288, %v1304
    %v1345 = vcombine.high %v1288, %v1304
    %v1347 = vunpack.c.l.s4 1934713408
    %v1348 = vunpack.c.0.s8 %v1347
    %v1349 = vlaneseq
    %v1350 = vshrl.u32 %v1349, 7
    %v1351 = vsub.s32 %v1348, %v1350
    %v1352 = vrot.slane %v1344, %v1351
    %v1354 = vunpack.c.l.s4 1934713408
    %v1355 = vunpack.c.0.s8 %v1354
    %v1356 = vlaneseq
    %v1357 = vshrl.u32 %v1356, 7
    %v1358 = vsub.s32 %v1355, %v1357
    %v1359 = vrot.slane %v1345, %v1358
    %v1360 = vcombine.low %v1295, %v1311
    %v1361 = vcombine.high %v1295, %v1311
    %v1363 = vunpack.c.l.s4 1934713408
    %v1364 = vunpack.c.0.s8 %v1363
    %v1365 = vlaneseq
    %v1366 = vshrl.u32 %v1365, 7
    %v1367 = vsub.s32 %v1364, %v1366
    %v1368 = vrot.slane %v1360, %v1367
    %v1370 = vunpack.c.l.s4 1934713408
    %v1371 = vunpack.c.0.s8 %v1370
    %v1372 = vlaneseq
    %v1373 = vshrl.u32 %v1372, 7
    %v1374 = vsub.s32 %v1371, %v1373
    %v1375 = vrot.slane %v1361, %v1374
    %v1376 = vcombine.low %v1320, %v1352
    %v1377 = vcombine.high %v1320, %v1352
    %v1378 = vcombine.low %v1327, %v1359
    %v1379 = vcombine.high %v1327, %v1359
    %v1380 = vcombine.low %v1336, %v1368
    %v1381 = vcombine.high %v1336, %v1368
    %v1382 = vcombine.low %v1343, %v1375
    %v1383 = vcombine.high %v1343, %v1375
    %1385 = vrot.lane.b32.xlu0 %v1241, 32
    %v1386 = vpop.permute.xlu0 %1385
    %1389 = vrot.lane.b32.xlu0 %v1242, 64
    %v1390 = vpop.permute.xlu0 %1389
    %1393 = vrot.lane.b32.xlu0 %v1243, 96
    %v1394 = vpop.permute.xlu0 %1393
    %1397 = vrot.lane.b32.xlu0 %v1245, 32
    %v1398 = vpop.permute.xlu0 %1397
    %1401 = vrot.lane.b32.xlu0 %v1246, 64
    %v1402 = vpop.permute.xlu0 %1401
    %1405 = vrot.lane.b32.xlu0 %v1247, 96
    %v1406 = vpop.permute.xlu0 %1405
    %1409 = vrot.lane.b32.xlu0 %v1377, 32
    %v1410 = vpop.permute.xlu0 %1409
    %1413 = vrot.lane.b32.xlu0 %v1378, 64
    %v1414 = vpop.permute.xlu0 %1413
    %1417 = vrot.lane.b32.xlu0 %v1379, 96
    %v1418 = vpop.permute.xlu0 %1417
    %1421 = vrot.lane.b32.xlu0 %v1381, 32
    %v1422 = vpop.permute.xlu0 %1421
    %1425 = vrot.lane.b32.xlu0 %v1382, 64
    %v1426 = vpop.permute.xlu0 %1425
    %1429 = vrot.lane.b32.xlu0 %v1383, 96
    %v1430 = vpop.permute.xlu0 %1429
    %v1432 = vsel %vm45, %v1240, %v1386
    %vm1433 = vcmask 523264
    %v1434 = vsel %vm1433, %v1432, %v1390
    %vm1435 = vcmask 785408
    %v1436 = vsel %vm1435, %v1434, %v1394
    %v1437 = vsel %vm45, %v1244, %v1398
    %v1438 = vsel %vm1433, %v1437, %v1402
    %v1439 = vsel %vm1435, %v1438, %v1406
    %v1440 = vsel %vm45, %v1376, %v1410
    %v1441 = vsel %vm1433, %v1440, %v1414
    %v1442 = vsel %vm1435, %v1441, %v1418
    %v1443 = vsel %vm45, %v1380, %v1422
    %v1444 = vsel %vm1433, %v1443, %v1426
    %v1445 = vsel %vm1435, %v1444, %v1430
    %1446 = vst [vmem:[#allocation2] sm:$0xff] %v1436
    %1447 = vst [vmem:[#allocation2 + $0x8] sm:$0xff] %v1439
    %1448 = vst [vmem:[#allocation2 + $0x10] sm:$0xff] %v1442
    %1449 = vst [vmem:[#allocation2 + $0x18] sm:$0xff] %v1445
    // Predicated region
    $region18: #{tpu_custom_call.1} parent=1 // pred_check
      _
    $region19: #{tpu_custom_call.1} parent=1 // pred_check_branch
      %1451 = sbr.rel (0) target = $region21
    $region20: #{tpu_custom_call.1} parent=1 // pred_region
      %s1453 = ssub.s32 512, 512
      %1454 = vsyncadd [#allocation3], %s1453
      %s1456 = sshll.u32 [#allocation2], 4
      %s1457 = int_to_ptr.vmem [resolvable:$true] %s1456
      %1459 = dma.vmem_to_hbm [thread:$0]  %s1457, 512, %s4, [#allocation3]
    $region21: #{tpu_custom_call.1} parent=1 // pred_fallthru
      _
    // Predicated region
    $region22: #{tpu_custom_call.1} parent=1 // pred_check
      _
    $region23: #{tpu_custom_call.1} parent=1 // pred_check_branch
      %1461 = sbr.rel (0) target = $region25
    $region24: #{tpu_custom_call.1} parent=1 // pred_region
      %1462 = dma.done [#allocation3], 512
    $region25: #{tpu_custom_call.1} parent=1 // pred_fallthru
      _
    %1463 = vsyncpa [#allocation3], 1

</llo_original>
